<compile_context>
chip_gen: v5e
topology: v5e:2x2
jax: 0.10.0
libtpu: 0.0.40
codegen_flags: <defaults>
</compile_context>

<pallas_src>
import functools

import jax
import jax.numpy as jnp
from jax.experimental import pallas as pl
from jax.experimental.pallas import tpu as pltpu

MAX_ROW_TILE = 512   # sublane tile for the flattened row dimension
MAX_K_TILE = 512     # reduction tile (multiple of 128 when tiled)
MAX_N_TILE = 512     # output-feature tile (multiple of 128 when tiled)
_PALLAS_MIN_FLOPS = 1 << 20  # below this, XLA's fused dot beats kernel dispatch


def _round_up(n, m):
    return ((n + m - 1) // m) * m


def _sublane_multiple(dtype):
    return {4: 8, 2: 16, 1: 32}[jnp.dtype(dtype).itemsize]


# ---------------------------------------------------------------------------
# Pallas kernel factory: one (row, N) output tile, reduced over the K grid axis
# ---------------------------------------------------------------------------
def _make_linear_kernel(rem_k, has_bias):
    """rem_k: d_in % tk (0 => no partial K block). has_bias: include bias ref."""

    def kernel(x_ref, w_ref, *rest):
        if has_bias:
            b_ref, o_ref, acc_ref = rest
        else:
            o_ref, acc_ref = rest

        k = pl.program_id(2)
        nk = pl.num_programs(2)

        @pl.when(k == 0)
        def _init():
            acc_ref[...] = jnp.zeros_like(acc_ref)

        x_blk = x_ref[...]
        w_blk = w_ref[...]
        if rem_k:
            # Last K block extends past d_in: OOB reads are garbage, so zero
            # both the x columns and the w rows past the valid range.
            not_last = k != nk - 1
            kx = jax.lax.broadcasted_iota(jnp.int32, x_blk.shape, 1)
            kw = jax.lax.broadcasted_iota(jnp.int32, w_blk.shape, 0)
            x_blk = jnp.where(jnp.logical_or(not_last, kx < rem_k), x_blk, 0)
            w_blk = jnp.where(jnp.logical_or(not_last, kw < rem_k), w_blk, 0)

        acc_ref[...] += jnp.dot(x_blk, w_blk,
                                preferred_element_type=jnp.float32)

        @pl.when(k == nk - 1)
        def _finalize():
            r = acc_ref[...]
            if has_bias:
                r = r + b_ref[...].astype(jnp.float32)  # bias add in f32
            o_ref[...] = r.astype(o_ref.dtype)

    return kernel


# ---------------------------------------------------------------------------
# Wrapper: y = x @ w (+ b) over the last axis of x
# ---------------------------------------------------------------------------
def my_linear(x, w, b=None, *, row_tile=None, k_tile=None, n_tile=None,
              force_pallas=False):
    """x: (..., d_in), w: (d_in, d_out), b: (1, d_out) or None."""
    lead = x.shape[:-1]
    d_in, d_out = w.shape

    x2 = x.reshape((-1, d_in))
    n_rows = x2.shape[0]
    flops = 2 * n_rows * d_in * d_out

    # Tiny problems: pallas_call dispatch overhead dominates; use fused XLA dot.
    if not force_pallas and flops < _PALLAS_MIN_FLOPS:
        y = jnp.dot(x2, w, preferred_element_type=jnp.float32)
        if b is not None:
            y = y + b.astype(jnp.float32)
        return y.astype(x.dtype).reshape(lead + (d_out,))

    # dtype-aware tile selection.
    sub = _sublane_multiple(x.dtype)
    rt = row_tile if row_tile is not None else min(MAX_ROW_TILE,
                                                   _round_up(n_rows, sub))
    rt = _round_up(rt, sub)
    tk = k_tile if k_tile is not None else (d_in if d_in <= MAX_K_TILE
                                            else MAX_K_TILE)
    tn = n_tile if n_tile is not None else (d_out if d_out <= MAX_N_TILE
                                            else MAX_N_TILE)
    rem_k = d_in % tk

    grid = (pl.cdiv(n_rows, rt), pl.cdiv(d_out, tn), pl.cdiv(d_in, tk))

    has_bias = b is not None
    in_specs = [
        pl.BlockSpec((rt, tk), lambda i, j, k: (i, k)),   # streamed rows
        pl.BlockSpec((tk, tn), lambda i, j, k: (k, j)),   # streamed weight tile
    ]
    operands = [x2, w]
    if has_bias:
        in_specs.append(pl.BlockSpec((1, tn), lambda i, j, k: (0, j)))
        operands.append(b)

    xb, wb, ob = x2.dtype.itemsize, w.dtype.itemsize, x.dtype.itemsize
    bias_bytes = (2 * tn * b.dtype.itemsize) if has_bias else 0
    est_bytes = (2 * rt * tk * xb + 2 * tk * tn * wb + bias_bytes
                 + 2 * rt * tn * ob + rt * tn * 4)
    vmem_limit = int(min(32 * 1024 * 1024, max(3 * est_bytes, 12 * 1024 * 1024)))

    bytes_accessed = (n_rows * d_in * xb + d_in * d_out * wb
                      + (d_out * b.dtype.itemsize if has_bias else 0)
                      + n_rows * d_out * ob)
    cost = pl.CostEstimate(flops=flops + (n_rows * d_out if has_bias else 0),
                           transcendentals=0,
                           bytes_accessed=bytes_accessed)

    out = pl.pallas_call(
        _make_linear_kernel(rem_k, has_bias),
        out_shape=jax.ShapeDtypeStruct((n_rows, d_out), x.dtype),
        grid=grid,
        in_specs=in_specs,
        out_specs=pl.BlockSpec((rt, tn), lambda i, j, k: (i, j)),
        scratch_shapes=[pltpu.VMEM((rt, tn), jnp.float32)],
        compiler_params=pltpu.CompilerParams(
            dimension_semantics=("parallel", "parallel", "arbitrary"),
            vmem_limit_bytes=vmem_limit),
        cost_estimate=cost,
    )(*operands)

    return out.reshape(lead + (d_out,))


# ---------------------------------------------------------------------------
# Module wrapper mirroring My_Linear (nn.Linear default init)
# ---------------------------------------------------------------------------
class MyLinear:
    def __init__(self, key, in_features, out_features, bias=True, name=None,
                 param_dtype=jnp.float32):
        kw, kb = jax.random.split(key)
        bound = 1.0 / (in_features ** 0.5)
        # Stored as (in, out) = transpose of torch's (out, in); same semantics.
        self.w = jax.random.uniform(kw, (in_features, out_features),
                                    jnp.float32, -bound, bound).astype(param_dtype)
        # Bias kept in f32; the kernel adds it in f32 regardless of operand dtype.
        self.b = (jax.random.uniform(kb, (1, out_features), jnp.float32,
                                     -bound, bound) if bias else None)
        self.name = name

    def __call__(self, x, verbose=False, force_pallas=False):
        if verbose:
            # Mirrors the torch module's host-side debug print (trace-time only).
            print(f"My_Linear - X.shape: {x.shape}, name: {self.name}")
        if x.dtype != self.w.dtype:
            x = x.astype(self.w.dtype)
        return my_linear(x, self.w, self.b, force_pallas=force_pallas)


if __name__ == "__main__":
    key = jax.random.PRNGKey(0)
    k1, k2, k3, kx = jax.random.split(key, 4)

    # --- Test 1: f32, demo shapes, forced through the Pallas kernel ---------
    B, S, IN_F, OUT_F = 2, 8, 64, 128
    layer = MyLinear(k1, IN_F, OUT_F, bias=True, name="demo")
    x = jax.random.normal(kx, (B, S, IN_F), jnp.float32)

    fwd = jax.jit(functools.partial(layer.__call__, force_pallas=True))
    out = jax.block_until_ready(fwd(x))
    assert out.shape == (B, S, OUT_F), out.shape
    assert out.dtype == jnp.float32
    assert bool(jnp.all(jnp.isfinite(out)))
    ref = x @ layer.w + layer.b
    assert bool(jnp.allclose(out, ref, atol=1e-5, rtol=1e-5)), (
        float(jnp.max(jnp.abs(out - ref))))

    # Auto path (tiny-problem bypass) must agree.
    out_auto = jax.block_until_ready(jax.jit(layer.__call__)(x))
    assert bool(jnp.allclose(out_auto, ref, atol=1e-5, rtol=1e-5))

    # --- Test 2: ragged rows + K-tiling with remainder + no bias ------------
    layer2 = MyLinear(k2, 200, 96, bias=False, name="ragged")
    x2 = jax.random.normal(kx, (3, 7, 200), jnp.float32)
    out2 = jax.block_until_ready(jax.jit(
        lambda a: my_linear(a, layer2.w, None, k_tile=128, force_pallas=True))(x2))
    ref2 = x2 @ layer2.w
    assert out2.shape == (3, 7, 96)
    assert bool(jnp.allclose(out2, ref2, atol=1e-4, rtol=1e-4)), (
        float(jnp.max(jnp.abs(out2 - ref2))))

    # --- Test 3: bf16 operand path, f32 accumulation -------------------------
    layer3 = MyLinear(k3, IN_F, OUT_F, bias=True, name="bf16",
                      param_dtype=jnp.bfloat16)
    x3 = x.astype(jnp.bfloat16)
    out3 = jax.block_until_ready(
        jax.jit(functools.partial(layer3.__call__, force_pallas=True))(x3))
    assert out3.dtype == jnp.bfloat16
    ref3 = x3.astype(jnp.float32) @ layer3.w.astype(jnp.float32) + layer3.b
    assert bool(jnp.allclose(out3.astype(jnp.float32), ref3,
                             atol=5e-2, rtol=2e-2)), (
        float(jnp.max(jnp.abs(out3.astype(jnp.float32) - ref3))))

    print("KERNEL_OK")
</pallas_src>

<mosaic_0001>
module attributes {stable_mosaic.version = 11 : i64} {
  func.func @kernel(%arg0: i32, %arg1: i32, %arg2: i32, %arg3: memref<16x64xf32, #tpu.memory_space<vmem>>, %arg4: memref<64x128xf32, #tpu.memory_space<vmem>>, %arg5: memref<1x128xf32, #tpu.memory_space<vmem>>, %arg6: memref<16x128xf32, #tpu.memory_space<vmem>>, %arg7: memref<16x128xf32, #tpu.memory_space<vmem>>) attributes {dimension_semantics = [#tpu.dimension_semantics<parallel>, #tpu.dimension_semantics<parallel>, #tpu.dimension_semantics<arbitrary>], iteration_bounds = array<i64: 1, 1, 1>, scalar_prefetch = 0 : i64, scratch_operands = 1 : i64, tpu.core_type = #tpu.core_type<tc>, window_params = [{transform_indices = @transform_0, window_bounds = array<i64: 16, 64>}, {transform_indices = @transform_1, window_bounds = array<i64: 64, 128>}, {transform_indices = @transform_2, window_bounds = array<i64: 1, 128>}, {transform_indices = @transform_3, window_bounds = array<i64: 16, 128>}]} {
    %c0_i32 = arith.constant 0 : i32
    %0 = arith.cmpi eq, %arg2, %c0_i32 : i32
    %1 = arith.extui %0 : i1 to i32
    %c0_i32_0 = arith.constant 0 : i32
    %2 = arith.cmpi ne, %1, %c0_i32_0 : i32
    scf.if %2 {
      %cst_10 = arith.constant 0.000000e+00 : f32
      %12 = vector.broadcast %cst_10 : f32 to vector<16x128xf32>
      %c0_11 = arith.constant 0 : index
      %c0_12 = arith.constant 0 : index
      %13 = vector.load %arg7[%c0_11, %c0_12] : memref<16x128xf32, #tpu.memory_space<vmem>>, vector<16x128xf32>
      tpu.vector_store %arg7[%c0_11, %c0_12], %12 {strides = array<i32>} : memref<16x128xf32, #tpu.memory_space<vmem>>, vector<16x128xf32>,
    } else {
    }
    %c0 = arith.constant 0 : index
    %c0_1 = arith.constant 0 : index
    %3 = vector.load %arg3[%c0, %c0_1] : memref<16x64xf32, #tpu.memory_space<vmem>>, vector<16x64xf32>
    %c0_2 = arith.constant 0 : index
    %c0_3 = arith.constant 0 : index
    %4 = vector.load %arg4[%c0_2, %c0_3] : memref<64x128xf32, #tpu.memory_space<vmem>>, vector<64x128xf32>
    %c0_4 = arith.constant 0 : index
    %c0_5 = arith.constant 0 : index
    %5 = vector.load %arg7[%c0_4, %c0_5] : memref<16x128xf32, #tpu.memory_space<vmem>>, vector<16x128xf32>
    %cst = arith.constant dense<0.000000e+00> : vector<16x128xf32>
    %6 = tpu.matmul %3, %4, %cst {dimension_numbers = #tpu.dot_dimension_numbers<[1], [0], [0], [1], [0, 0, 1, 1], [], []>} : vector<16x64xf32>, vector<64x128xf32>, vector<16x128xf32> -> vector<16x128xf32>
    %7 = arith.addf %5, %6 : vector<16x128xf32>
    %c0_6 = arith.constant 0 : index
    %c0_7 = arith.constant 0 : index
    %8 = vector.load %arg7[%c0_6, %c0_7] : memref<16x128xf32, #tpu.memory_space<vmem>>, vector<16x128xf32>
    tpu.vector_store %arg7[%c0_6, %c0_7], %7 {strides = array<i32>} : memref<16x128xf32, #tpu.memory_space<vmem>>, vector<16x128xf32>,
    %c0_i32_8 = arith.constant 0 : i32
    %9 = arith.cmpi eq, %arg2, %c0_i32_8 : i32
    %10 = arith.extui %9 : i1 to i32
    %c0_i32_9 = arith.constant 0 : i32
    %11 = arith.cmpi ne, %10, %c0_i32_9 : i32
    scf.if %11 {
      %c0_10 = arith.constant 0 : index
      %c0_11 = arith.constant 0 : index
      %12 = vector.load %arg7[%c0_10, %c0_11] : memref<16x128xf32, #tpu.memory_space<vmem>>, vector<16x128xf32>
      %c0_12 = arith.constant 0 : index
      %c0_13 = arith.constant 0 : index
      %13 = vector.load %arg5[%c0_12, %c0_13] : memref<1x128xf32, #tpu.memory_space<vmem>>, vector<1x128xf32>
      %14 = vector.broadcast %13 : vector<1x128xf32> to vector<16x128xf32>
      %15 = arith.addf %12, %14 : vector<16x128xf32>
      %c0_14 = arith.constant 0 : index
      %c0_15 = arith.constant 0 : index
      %16 = vector.load %arg6[%c0_14, %c0_15] : memref<16x128xf32, #tpu.memory_space<vmem>>, vector<16x128xf32>
      tpu.vector_store %arg6[%c0_14, %c0_15], %15 {strides = array<i32>} : memref<16x128xf32, #tpu.memory_space<vmem>>, vector<16x128xf32>,
    } else {
    }
    return
  }
  func.func @transform_0(%arg0: i32, %arg1: i32, %arg2: i32) -> (i32, i32) {
    %c0_i32 = arith.constant 0 : i32
    return %arg0, %arg2 : i32, i32
  }
  func.func @transform_1(%arg0: i32, %arg1: i32, %arg2: i32) -> (i32, i32) {
    %c0_i32 = arith.constant 0 : i32
    return %arg2, %arg1 : i32, i32
  }
  func.func @transform_2(%arg0: i32, %arg1: i32, %arg2: i32) -> (i32, i32) {
    %c0_i32 = arith.constant 0 : i32
    %c0_i32_0 = arith.constant 0 : i32
    return %c0_i32, %arg1 : i32, i32
  }
  func.func @transform_3(%arg0: i32, %arg1: i32, %arg2: i32) -> (i32, i32) {
    %c0_i32 = arith.constant 0 : i32
    return %arg0, %arg1 : i32, i32
  }
}

</mosaic_0001>

<llo_original>
// kernel: a_call__.1
$region0: #{a_call__.1}
  #allocation0 [shape = 'u32[]', space=smem, size = 0x4, offset = 0x4, fixed_abs, tag = 'smem constant byte address 0x4 - core index']
  #allocation1 [shape = 'u32[72,128]{1,0:T(1,128)}', space=vmem, size = 0x9000, scoped, tag = 'internal scratch']
  #allocation2 [shape = 'f32[16,128]{1,0:T(8,128)}', space=vmem, size = 0x2000, scoped, tag = 'scratch operand']
  %s0 = inlined_call_operand.hbm [shape: f32[16,64], index: 0, kind: input, shape index: {}]
  %s1 = inlined_call_operand.hbm [shape: f32[64,128], index: 1, kind: input, shape index: {}]
  %s2 = inlined_call_operand.vmem [shape: f32[1,128], index: 2, kind: input, shape index: {}]
  %s3 = inlined_call_operand.hbm [shape: f32[16,128], index: 3, kind: output, shape index: {}]
  %s4 = sld [smem:[#allocation0]]
  $region38: #{a_call__.1} parent=0
    _
  %s6 = ssub.s32 1, %s4
  %s7 = scalar_select 0, %s6, %s4
  $region1: #{a_call__.1} parent=0
    #allocation3 [shape = 'u8[8192]{0}', space=vmem, size = 0x2000, scoped, tag = 'input window, operand 0, single buffered']
    #allocation4 [shape = 's32[1]{0}', space=sflag, size = 0x4, scoped, tag = 'scoped memory for a_call__.1']
    #allocation5 [shape = 's32[1]{0}', space=sflag, size = 0x4, scoped, tag = 'scoped memory for a_call__.1']
    #allocation6 [shape = 'u8[32768]{0}', space=vmem, size = 0x8000, scoped, tag = 'input window, operand 1, single buffered']
    #allocation7 [shape = 's32[1]{0}', space=sflag, size = 0x4, scoped, tag = 'scoped memory for a_call__.1']
    #allocation8 [shape = 'u8[8192]{0}', space=vmem, size = 0x2000, scoped, tag = 'output window, operand 0, single buffered']
    %8 = vsyncpa [#allocation4], 0
    %9 = vsyncpa [#allocation7], 0
    %10 = vsyncpa [#allocation5], 0
    // Predicated region
    $region2: #{a_call__.1} parent=1 // pred_check
      _
    $region3: #{a_call__.1} parent=1 // pred_check_branch
      %12 = sbr.rel (0) target = $region5
    $region4: #{a_call__.1} parent=1 // pred_region
      %14 = vsyncadd [#allocation4], 0
      %s15 = sshll.u32 %s0, 4
      %s16 = int_to_ptr.hbm [resolvable:$true] %s15
      %s17 = sshll.u32 [#allocation3], 4
      %s18 = int_to_ptr.vmem [resolvable:$true] %s17
      %23 = dma.hbm_to_vmem [thread:$0]  %s16, 256, %s18, [#allocation4], 128, 128, 8
    $region5: #{a_call__.1} parent=1 // pred_fallthru
      _
    // Predicated region
    $region6: #{a_call__.1} parent=1 // pred_check
      _
    $region7: #{a_call__.1} parent=1 // pred_check_branch
      %25 = sbr.rel (0) target = $region9
    $region8: #{a_call__.1} parent=1 // pred_region
      %27 = vsyncadd [#allocation7], 0
      %s28 = sshll.u32 %s1, 4
      %s29 = int_to_ptr.hbm [resolvable:$true] %s28
      %s30 = sshll.u32 [#allocation6], 4
      %s31 = int_to_ptr.vmem [resolvable:$true] %s30
      %36 = dma.hbm_to_vmem [thread:$0]  %s29, 1024, %s31, [#allocation7], 128, 128, 8
    $region9: #{a_call__.1} parent=1 // pred_fallthru
      _
    // Predicated region
    $region10: #{a_call__.1} parent=1 // pred_check
      _
    $region11: #{a_call__.1} parent=1 // pred_check_branch
      %38 = sbr.rel (0) target = $region13
    $region12: #{a_call__.1} parent=1 // pred_region
      _
    $region13: #{a_call__.1} parent=1 // pred_fallthru
      _
    // Predicated region
    $region14: #{a_call__.1} parent=1 // pred_check
      _
    $region15: #{a_call__.1} parent=1 // pred_check_branch
      %40 = sbr.rel (0) target = $region17
    $region16: #{a_call__.1} parent=1 // pred_region
      %42 = dma.done [#allocation4], 256
    $region17: #{a_call__.1} parent=1 // pred_fallthru
      _
    // Predicated region
    $region18: #{a_call__.1} parent=1 // pred_check
      _
    $region19: #{a_call__.1} parent=1 // pred_check_branch
      %44 = sbr.rel (0) target = $region21
    $region20: #{a_call__.1} parent=1 // pred_region
      %46 = dma.done [#allocation7], 1024
    $region21: #{a_call__.1} parent=1 // pred_fallthru
      _
    %p47 = scmp.eq.s32.totalorder 0, 0
    // Predicated region
    $region22: #{a_call__.1} parent=1 // pred_check
      %p48 = pneg %p47
    $region23: #{a_call__.1} parent=1 // pred_check_branch
      %50 = sbr.rel (%p48) target = $region25
    $region24: #{a_call__.1} parent=1 // pred_region
      %51 = vst [vmem:[#allocation2] sm:$0xff] 0.0
      %52 = vst [vmem:[#allocation2 + $0x8] sm:$0xff] 0.0
    $region25: #{a_call__.1} parent=1 // pred_fallthru
      _
    %v53 = vld [vmem:[#allocation3] sm:$0xff]
    %v54 = vld [vmem:[#allocation3 + $0x8] sm:$0xff]
    %v55 = vld [vmem:[#allocation6] sm:$0xff]
    %v56 = vld [vmem:[#allocation6 + $0x8] sm:$0xff]
    %v57 = vld [vmem:[#allocation6 + $0x10] sm:$0xff]
    %v58 = vld [vmem:[#allocation6 + $0x18] sm:$0xff]
    %v59 = vld [vmem:[#allocation6 + $0x20] sm:$0xff]
    %v60 = vld [vmem:[#allocation6 + $0x28] sm:$0xff]
    %v61 = vld [vmem:[#allocation6 + $0x30] sm:$0xff]
    %v62 = vld [vmem:[#allocation6 + $0x38] sm:$0xff]
    %v63 = vld [vmem:[#allocation2] sm:$0xff]
    %v64 = vld [vmem:[#allocation2 + $0x8] sm:$0xff]
    %vm65 = vcmask 523264
    %v67 = vsel %vm65, %v53, 0
    %v70 = vsel %vm65, %v54, 0
    %72 = vmatpush.msra.mxu0 0.0
    %73 = vmatpush.msra.mxu0 0.0
    %74 = vmatpush.msra.mxu0 0.0
    %75 = vmatpush.msra.mxu0 0.0
    %76 = vmatpush.msra.mxu0 0.0
    %77 = vmatpush.msra.mxu0 0.0
    %78 = vmatpush.msra.mxu0 0.0
    %79 = vmatpush.msra.mxu0 0.0
    %80 = vmatpush.msra.mxu0 %v62
    %81 = vmatpush.msra.mxu0 %v61
    %82 = vmatpush.msra.mxu0 %v60
    %83 = vmatpush.msra.mxu0 %v59
    %84 = vmatpush.msra.mxu0 %v58
    %85 = vmatpush.msra.mxu0 %v57
    %86 = vmatpush.msra.mxu0 %v56
    %87 = vmatpush.msra.mxu0 %v55
    %88 = vmatmul.f32.gmra.mxu0 %v67
    %v89 = vpop.f32.mrf.mxu0
    %v90 = vadd.f32 0.0, %v89
    %91 = vmatmul.f32.gmra.mxu0 %v70
    %v92 = vpop.f32.mrf.mxu0
    %v93 = vadd.f32 0.0, %v92
    %94 = vdwg.mxu0
    %v95 = vadd.f32 %v63, %v90
    %v96 = vadd.f32 %v64, %v93
    %97 = vst [vmem:[#allocation2] sm:$0xff] %v95
    %98 = vst [vmem:[#allocation2 + $0x8] sm:$0xff] %v96
    // Predicated region
    $region26: #{a_call__.1} parent=1 // pred_check
      %p99 = pneg %p47
    $region27: #{a_call__.1} parent=1 // pred_check_branch
      %101 = sbr.rel (%p99) target = $region29
    $region28: #{a_call__.1} parent=1 // pred_region
      %v102 = vld [vmem:[#allocation2] sm:$0xff]
      %v103 = vld [vmem:[#allocation2 + $0x8] sm:$0xff]
      %v104 = vld [vmem:[%s2] sm:$0x1]
      %v106 = vperm.slane %v104, 0
      %v108 = vadd.f32 %v102, %v106
      %v109 = vadd.f32 %v103, %v106
      %110 = vst [vmem:[#allocation8] sm:$0xff] %v108
      %111 = vst [vmem:[#allocation8 + $0x8] sm:$0xff] %v109
    $region29: #{a_call__.1} parent=1 // pred_fallthru
      _
    // Predicated region
    $region30: #{a_call__.1} parent=1 // pred_check
      _
    $region31: #{a_call__.1} parent=1 // pred_check_branch
      %113 = sbr.rel (0) target = $region33
    $region32: #{a_call__.1} parent=1 // pred_region
      %115 = vsyncadd [#allocation5], 0
      %s116 = sshll.u32 [#allocation8], 4
      %s117 = int_to_ptr.vmem [resolvable:$true] %s116
      %s118 = sshll.u32 %s3, 4
      %s119 = int_to_ptr.hbm [resolvable:$true] %s118
      %124 = dma.vmem_to_hbm [thread:$0]  %s117, 256, %s119, [#allocation5], 128, 128, 8
    $region33: #{a_call__.1} parent=1 // pred_fallthru
      _
    // Predicated region
    $region34: #{a_call__.1} parent=1 // pred_check
      _
    $region35: #{a_call__.1} parent=1 // pred_check_branch
      %126 = sbr.rel (0) target = $region37
    $region36: #{a_call__.1} parent=1 // pred_region
      %128 = dma.done [#allocation5], 256
    $region37: #{a_call__.1} parent=1 // pred_fallthru
      _
    %129 = vsyncpa [#allocation4], 1
    %130 = vsyncpa [#allocation7], 1
    %131 = vsyncpa [#allocation5], 1

</llo_original>
